<compile_context>
chip_gen: v6e
topology: v6e:2x2x1
jax: 0.10.0
libtpu: 0.0.40
codegen_flags: <defaults>
</compile_context>

<pallas_src>
import jax
import jax.numpy as jnp
import numpy as np
from jax.experimental import pallas as pl
from jax.experimental.pallas import tpu as pltpu

LN_EPS = 1e-5  # torch nn.LayerNorm default


def _layernorm(v, g, b):
    mu = jnp.mean(v, axis=-1, keepdims=True)
    var = jnp.mean((v - mu) ** 2, axis=-1, keepdims=True)
    return (v - mu) * jax.lax.rsqrt(var + LN_EPS) * g + b


# Rows of the packed (4, D) small-parameter array.
_LNC_G, _LNC_B, _BKS, _BFFP = 0, 1, 2, 3
_N_VEC = 4


def decoder_kernel(x_ref, qpT_ref, wkv_ref, resb_ref, wcol_ref, vec_ref, out_ref):
    D = x_ref.shape[-1]
    x = x_ref[0]                                   # (S, D) context for this batch element
    vec = vec_ref[...]                             # (4, D) packed small params

    # Context LayerNorm (the only LayerNorm left per step; query-side LN is pre-folded).
    xn = _layernorm(x, vec[_LNC_G:_LNC_G + 1], vec[_LNC_B:_LNC_B + 1])

    # Fused K'/V' projection.  wkv is pre-transposed (D, 2D):
    #   K' = xn @ (Wk/sqrt(D)).T + bk/sqrt(D)      (scale folded at pack time)
    #   V' = xn @ (Wo @ Wv).T                      (output proj folded; bias in resb)
    kv = jnp.dot(xn, wkv_ref[...], preferred_element_type=jnp.float32)   # (S, 2D)
    Kp = kv[:, :D] + vec[_BKS:_BKS + 1]
    Vp = kv[:, D:]

    # Scores with Q on the lane axis: (S, Q).  QpT precomputed at pack time.
    sT = jnp.dot(Kp, qpT_ref[...], preferred_element_type=jnp.float32)   # (S, Q)
    m = jnp.max(sT, axis=0, keepdims=True)
    p = jnp.exp(sT - m)
    denom = jnp.sum(p, axis=0, keepdims=True)                            # (1, Q)

    # attnT = V'.T @ p (contract S) -> (D, Q); softmax normalization deferred to here.
    attnT = jax.lax.dot_general(Vp, p, (((0,), (0,)), ((), ())),
                                preferred_element_type=jnp.float32)      # (D, Q)
    resT = attnT * pl.reciprocal(denom, approx=False) + resb_ref[...]    # (D, Q)

    # LayerNorm2 + Linear(dim, 1), entirely in the transposed (D, Q) layout.
    # y = (sum_d (wff*g2)_d * (res_d - mu)) * rsqrt(var + eps) + (bff + sum(wff*b2))
    mu = jnp.mean(resT, axis=0, keepdims=True)                           # (1, Q)
    d = resT - mu
    var = jnp.mean(d * d, axis=0, keepdims=True)                         # (1, Q)
    wd = jnp.sum(d * wcol_ref[...], axis=0, keepdims=True)               # (1, Q)
    y = wd * jax.lax.rsqrt(var + LN_EPS) + vec[_BFFP:_BFFP + 1, 0:1]     # (1, Q)
    out_ref[0] = y


def pack_decoder_params(params):
    """Precompute every batch-invariant quantity and pre-transpose all weights."""
    D = params["wq"].shape[0]
    scale = 1.0 / jnp.sqrt(jnp.float32(D))         # head_dim = D (n_heads = 1)

    # Batch-invariant query projection, stored transposed (D, Q).
    q = params["queries"][0]                                            # (Q, D)
    qn = _layernorm(q, params["lnq_g"], params["lnq_b"])
    qpT = (qn @ params["wq"].T + params["bq"]).T                        # (D, Q)

    # Fold Wo into Wv; residual base = queries + (bv @ Wo.T + bo), transposed.
    w_voT = params["wv"].T @ params["wo"].T                             # (D, D) == (Wo@Wv).T
    b_vo = params["bv"] @ params["wo"].T + params["bo"]                 # (1, D)
    resbT = q.T + b_vo.T                                                # (D, Q)

    # Fused, pre-transposed K / V' weight: (D, 2D); 1/sqrt(D) folded into K side.
    wkvT = jnp.concatenate([params["wk"].T * scale, w_voT], axis=1)

    # LN2 gain folded into the final Linear(dim, 1); LN2 bias folded into its bias.
    wffg = params["wff"] * params["ln2_g"]                              # (1, D)
    wcol = wffg.T                                                       # (D, 1)
    bffp = params["bff"][0, 0] + jnp.sum(params["wff"] * params["ln2_b"])

    vec = jnp.concatenate([
        params["lnc_g"], params["lnc_b"],
        params["bk"] * scale,
        jnp.full((1, D), bffp, jnp.float32)], axis=0)                   # (4, D)

    return {"qpT": qpT, "wkvT": wkvT, "resbT": resbT, "wcol": wcol, "vec": vec}


def decoder_forward(packed, x, coords=None, bilinear_queries=None):
    # coords / bilinear_queries are unused by the reference torch forward.
    del coords, bilinear_queries
    B, S, D = x.shape
    Q = packed["qpT"].shape[-1]
    assert Q % 128 == 0, "query count must be a multiple of 128 (lane-dense output)"

    def const(shape):
        return pl.BlockSpec(shape, lambda b: (0,) * len(shape))

    in_specs = [
        pl.BlockSpec((1, S, D), lambda b: (b, 0, 0)),   # context x (per batch element)
        const((D, Q)),                                  # precomputed Q'.T
        const((D, 2 * D)),                              # fused pre-transposed [Wk*s ; Wo@Wv]
        const((D, Q)),                                  # residual base (queries.T + b_vo)
        const((D, 1)),                                  # (wff * ln2_g).T column
        const((_N_VEC, D)),                             # packed small params
    ]
    out_spec = pl.BlockSpec((1, 1, Q), lambda b: (b, 0, 0))

    fn = pl.pallas_call(
        decoder_kernel,
        out_shape=jax.ShapeDtypeStruct((B, 1, Q), jnp.float32),
        grid=(B,),
        in_specs=in_specs,
        out_specs=out_spec,
        compiler_params=pltpu.CompilerParams(
            dimension_semantics=("parallel",)),
    )
    out = fn(x, packed["qpT"], packed["wkvT"], packed["resbT"],
             packed["wcol"], packed["vec"])
    # (B, 1, Q) -> (B, Q, 1): identical row-major memory order, free reshape.
    return out.reshape(B, Q, 1)


def init_params(key, dim, output_dim):
    Q = output_dim ** 2
    ks = jax.random.split(key, 10)
    s = 1.0 / jnp.sqrt(jnp.float32(dim))
    f32 = jnp.float32
    return {
        "queries": jax.random.normal(ks[0], (1, Q, dim), f32),
        "lnq_g": 1.0 + 0.1 * jax.random.normal(ks[1], (1, dim), f32),
        "lnq_b": 0.1 * jax.random.normal(ks[2], (1, dim), f32),
        "lnc_g": 1.0 + 0.1 * jax.random.normal(ks[3], (1, dim), f32),
        "lnc_b": 0.1 * jax.random.normal(ks[4], (1, dim), f32),
        "wq": jax.random.normal(ks[5], (dim, dim), f32) * s,
        "wk": jax.random.normal(ks[6], (dim, dim), f32) * s,
        "wv": jax.random.normal(ks[7], (dim, dim), f32) * s,
        "bq": jnp.zeros((1, dim), f32),
        "bk": jnp.zeros((1, dim), f32),
        "bv": jnp.zeros((1, dim), f32),
        "wo": jax.random.normal(ks[8], (dim, dim), f32) * s,
        "bo": jnp.zeros((1, dim), f32),
        "ln2_g": jnp.ones((1, dim), f32),
        "ln2_b": jnp.zeros((1, dim), f32),
        "wff": jax.random.normal(ks[9], (1, dim), f32) * s,
        "bff": jnp.full((1, 1), 0.05, f32),
    }


def decoder_reference(params, x):
    # Pure-JAX reference of the torch forward (for correctness check).
    B, S, D = x.shape
    q = jnp.broadcast_to(params["queries"], (B,) + params["queries"].shape[1:])

    def ln(v, g, b):
        mu = v.mean(-1, keepdims=True)
        var = ((v - mu) ** 2).mean(-1, keepdims=True)
        return (v - mu) / jnp.sqrt(var + LN_EPS) * g + b

    qn = ln(q, params["lnq_g"], params["lnq_b"])
    xn = ln(x, params["lnc_g"], params["lnc_b"])
    Qp = qn @ params["wq"].T + params["bq"]
    Kp = xn @ params["wk"].T + params["bk"]
    Vp = xn @ params["wv"].T + params["bv"]
    scores = jnp.einsum("bqd,bkd->bqk", Qp, Kp) / jnp.sqrt(jnp.float32(D))
    p = jax.nn.softmax(scores, axis=-1)
    attn = jnp.einsum("bqk,bkd->bqd", p, Vp) @ params["wo"].T + params["bo"]
    res = attn + q
    r2 = ln(res, params["ln2_g"], params["ln2_b"])
    return jnp.sum(r2 * params["wff"], axis=-1, keepdims=True) + params["bff"][0, 0]


if __name__ == "__main__":
    dim, n_heads, output_dim = 32, 1, 16          # Q = output_dim**2 = 256
    B, S = 2, 8

    key = jax.random.PRNGKey(0)
    kp, kx, kc, kb = jax.random.split(key, 4)
    params = init_params(kp, dim, output_dim)
    x = jax.random.normal(kx, (B, S, dim), jnp.float32)
    # Unused by the forward (kept only for signature parity with the torch module).
    coords = jax.random.normal(kc, (B, output_dim ** 2, 2), jnp.float32)
    bilinear_queries = jax.random.normal(kb, (B, output_dim ** 2, dim), jnp.float32)

    packed = pack_decoder_params(params)
    out = decoder_forward(packed, x, coords, bilinear_queries)
    out = jax.block_until_ready(out)
    assert out.shape == (B, output_dim ** 2, 1)

    ref = decoder_reference(params, x)
    np.testing.assert_allclose(np.asarray(out), np.asarray(ref),
                               atol=3e-5, rtol=3e-5)
    print("KERNEL_OK")
</pallas_src>

<mosaic_0001>
module attributes {stable_mosaic.version = 11 : i64} {
  func.func @decoder_kernel(%arg0: i32, %arg1: memref<1x8x32xf32, #tpu.memory_space<vmem>>, %arg2: memref<32x256xf32, #tpu.memory_space<vmem>>, %arg3: memref<32x64xf32, #tpu.memory_space<vmem>>, %arg4: memref<32x256xf32, #tpu.memory_space<vmem>>, %arg5: memref<32x1xf32, #tpu.memory_space<vmem>>, %arg6: memref<4x32xf32, #tpu.memory_space<vmem>>, %arg7: memref<1x1x256xf32, #tpu.memory_space<vmem>>) attributes {dimension_semantics = [#tpu.dimension_semantics<parallel>], iteration_bounds = array<i64: 2>, scalar_prefetch = 0 : i64, scratch_operands = 0 : i64, tpu.core_type = #tpu.core_type<tc>, window_params = [{transform_indices = @transform_0, window_bounds = array<i64: 1, 8, 32>}, {pipeline_mode = #tpu.pipeline_mode<synchronous>, transform_indices = @transform_1, window_bounds = array<i64: 32, 256>}, {pipeline_mode = #tpu.pipeline_mode<synchronous>, transform_indices = @transform_2, window_bounds = array<i64: 32, 64>}, {pipeline_mode = #tpu.pipeline_mode<synchronous>, transform_indices = @transform_3, window_bounds = array<i64: 32, 256>}, {pipeline_mode = #tpu.pipeline_mode<synchronous>, transform_indices = @transform_4, window_bounds = array<i64: 32, 1>}, {pipeline_mode = #tpu.pipeline_mode<synchronous>, transform_indices = @transform_5, window_bounds = array<i64: 4, 32>}, {transform_indices = @transform_6, window_bounds = array<i64: 1, 1, 256>}]} {
    %c0 = arith.constant 0 : index
    %c0_0 = arith.constant 0 : index
    %c0_1 = arith.constant 0 : index
    %0 = vector.load %arg1[%c0, %c0_0, %c0_1] : memref<1x8x32xf32, #tpu.memory_space<vmem>>, vector<1x8x32xf32>
    %1 = vector.shape_cast %0 : vector<1x8x32xf32> to vector<8x32xf32>
    %c0_2 = arith.constant 0 : index
    %c0_3 = arith.constant 0 : index
    %2 = vector.load %arg6[%c0_2, %c0_3] : memref<4x32xf32, #tpu.memory_space<vmem>>, vector<4x32xf32>
    %3 = vector.extract_strided_slice %2 {offsets = [0, 0], sizes = [1, 32], strides = [1, 1]} : vector<4x32xf32> to vector<1x32xf32>
    %4 = vector.extract_strided_slice %2 {offsets = [1, 0], sizes = [1, 32], strides = [1, 1]} : vector<4x32xf32> to vector<1x32xf32>
    %cst = arith.constant dense<0.000000e+00> : vector<8xf32>
    %5 = vector.multi_reduction <add>, %1, %cst [1] : vector<8x32xf32> to vector<8xf32>
    %6 = vector.shape_cast %5 : vector<8xf32> to vector<8x1xf32>
    %cst_4 = arith.constant 3.200000e+01 : f32
    %7 = vector.broadcast %cst_4 : f32 to vector<8x1xf32>
    %8 = arith.divf %6, %7 : vector<8x1xf32>
    %9 = vector.broadcast %8 : vector<8x1xf32> to vector<8x32xf32>
    %10 = arith.subf %1, %9 : vector<8x32xf32>
    %11 = arith.mulf %10, %10 : vector<8x32xf32>
    %cst_5 = arith.constant dense<0.000000e+00> : vector<8xf32>
    %12 = vector.multi_reduction <add>, %11, %cst_5 [1] : vector<8x32xf32> to vector<8xf32>
    %13 = vector.shape_cast %12 : vector<8xf32> to vector<8x1xf32>
    %cst_6 = arith.constant 3.200000e+01 : f32
    %14 = vector.broadcast %cst_6 : f32 to vector<8x1xf32>
    %15 = arith.divf %13, %14 : vector<8x1xf32>
    %16 = vector.broadcast %8 : vector<8x1xf32> to vector<8x32xf32>
    %17 = arith.subf %1, %16 : vector<8x32xf32>
    %cst_7 = arith.constant 9.99999974E-6 : f32
    %18 = vector.broadcast %cst_7 : f32 to vector<8x1xf32>
    %19 = arith.addf %15, %18 : vector<8x1xf32>
    %20 = math.rsqrt %19 : vector<8x1xf32>
    %21 = vector.broadcast %20 : vector<8x1xf32> to vector<8x32xf32>
    %22 = arith.mulf %17, %21 : vector<8x32xf32>
    %23 = vector.broadcast %3 : vector<1x32xf32> to vector<8x32xf32>
    %24 = arith.mulf %22, %23 : vector<8x32xf32>
    %25 = vector.broadcast %4 : vector<1x32xf32> to vector<8x32xf32>
    %26 = arith.addf %24, %25 : vector<8x32xf32>
    %c0_8 = arith.constant 0 : index
    %c0_9 = arith.constant 0 : index
    %27 = vector.load %arg3[%c0_8, %c0_9] : memref<32x64xf32, #tpu.memory_space<vmem>>, vector<32x64xf32>
    %cst_10 = arith.constant dense<0.000000e+00> : vector<8x64xf32>
    %28 = tpu.matmul %26, %27, %cst_10 {dimension_numbers = #tpu.dot_dimension_numbers<[1], [0], [0], [1], [0, 0, 1, 1], [], []>} : vector<8x32xf32>, vector<32x64xf32>, vector<8x64xf32> -> vector<8x64xf32>
    %29 = vector.extract_strided_slice %28 {offsets = [0, 0], sizes = [8, 32], strides = [1, 1]} : vector<8x64xf32> to vector<8x32xf32>
    %30 = vector.extract_strided_slice %2 {offsets = [2, 0], sizes = [1, 32], strides = [1, 1]} : vector<4x32xf32> to vector<1x32xf32>
    %31 = vector.broadcast %30 : vector<1x32xf32> to vector<8x32xf32>
    %32 = arith.addf %29, %31 : vector<8x32xf32>
    %33 = vector.extract_strided_slice %28 {offsets = [0, 32], sizes = [8, 32], strides = [1, 1]} : vector<8x64xf32> to vector<8x32xf32>
    %c0_11 = arith.constant 0 : index
    %c0_12 = arith.constant 0 : index
    %34 = vector.load %arg2[%c0_11, %c0_12] : memref<32x256xf32, #tpu.memory_space<vmem>>, vector<32x256xf32>
    %cst_13 = arith.constant dense<0.000000e+00> : vector<8x256xf32>
    %35 = tpu.matmul %32, %34, %cst_13 {dimension_numbers = #tpu.dot_dimension_numbers<[1], [0], [0], [1], [0, 0, 1, 1], [], []>} : vector<8x32xf32>, vector<32x256xf32>, vector<8x256xf32> -> vector<8x256xf32>
    %cst_14 = arith.constant dense<0xFF800000> : vector<256xf32>
    %36 = vector.multi_reduction <maximumf>, %35, %cst_14 [0] : vector<8x256xf32> to vector<256xf32>
    %37 = vector.shape_cast %36 : vector<256xf32> to vector<1x256xf32>
    %38 = vector.broadcast %37 : vector<1x256xf32> to vector<8x256xf32>
    %39 = arith.subf %35, %38 : vector<8x256xf32>
    %40 = math.exp %39 : vector<8x256xf32>
    %cst_15 = arith.constant dense<0.000000e+00> : vector<256xf32>
    %41 = vector.multi_reduction <add>, %40, %cst_15 [0] : vector<8x256xf32> to vector<256xf32>
    %42 = vector.shape_cast %41 : vector<256xf32> to vector<1x256xf32>
    %cst_16 = arith.constant dense<0.000000e+00> : vector<32x256xf32>
    %43 = tpu.matmul %33, %40, %cst_16 {dimension_numbers = #tpu.dot_dimension_numbers<[0], [0], [1], [1], [0, 1, 1, 1], [], []>} : vector<8x32xf32>, vector<8x256xf32>, vector<32x256xf32> -> vector<32x256xf32>
    %44 = tpu.reciprocal %42 : vector<1x256xf32> -> vector<1x256xf32>
    %45 = vector.broadcast %44 : vector<1x256xf32> to vector<32x256xf32>
    %46 = arith.mulf %43, %45 : vector<32x256xf32>
    %c0_17 = arith.constant 0 : index
    %c0_18 = arith.constant 0 : index
    %47 = vector.load %arg4[%c0_17, %c0_18] : memref<32x256xf32, #tpu.memory_space<vmem>>, vector<32x256xf32>
    %48 = arith.addf %46, %47 : vector<32x256xf32>
    %cst_19 = arith.constant dense<0.000000e+00> : vector<256xf32>
    %49 = vector.multi_reduction <add>, %48, %cst_19 [0] : vector<32x256xf32> to vector<256xf32>
    %50 = vector.shape_cast %49 : vector<256xf32> to vector<1x256xf32>
    %cst_20 = arith.constant 3.200000e+01 : f32
    %51 = vector.broadcast %cst_20 : f32 to vector<1x256xf32>
    %52 = arith.divf %50, %51 : vector<1x256xf32>
    %53 = vector.broadcast %52 : vector<1x256xf32> to vector<32x256xf32>
    %54 = arith.subf %48, %53 : vector<32x256xf32>
    %55 = arith.mulf %54, %54 : vector<32x256xf32>
    %cst_21 = arith.constant dense<0.000000e+00> : vector<256xf32>
    %56 = vector.multi_reduction <add>, %55, %cst_21 [0] : vector<32x256xf32> to vector<256xf32>
    %57 = vector.shape_cast %56 : vector<256xf32> to vector<1x256xf32>
    %cst_22 = arith.constant 3.200000e+01 : f32
    %58 = vector.broadcast %cst_22 : f32 to vector<1x256xf32>
    %59 = arith.divf %57, %58 : vector<1x256xf32>
    %c0_23 = arith.constant 0 : index
    %c0_24 = arith.constant 0 : index
    %60 = vector.load %arg5[%c0_23, %c0_24] : memref<32x1xf32, #tpu.memory_space<vmem>>, vector<32x1xf32>
    %61 = vector.broadcast %60 : vector<32x1xf32> to vector<32x256xf32>
    %62 = arith.mulf %54, %61 : vector<32x256xf32>
    %cst_25 = arith.constant dense<0.000000e+00> : vector<256xf32>
    %63 = vector.multi_reduction <add>, %62, %cst_25 [0] : vector<32x256xf32> to vector<256xf32>
    %64 = vector.shape_cast %63 : vector<256xf32> to vector<1x256xf32>
    %cst_26 = arith.constant 9.99999974E-6 : f32
    %65 = vector.broadcast %cst_26 : f32 to vector<1x256xf32>
    %66 = arith.addf %59, %65 : vector<1x256xf32>
    %67 = math.rsqrt %66 : vector<1x256xf32>
    %68 = arith.mulf %64, %67 : vector<1x256xf32>
    %69 = vector.extract_strided_slice %2 {offsets = [3, 0], sizes = [1, 1], strides = [1, 1]} : vector<4x32xf32> to vector<1x1xf32>
    %70 = vector.broadcast %69 : vector<1x1xf32> to vector<1x256xf32>
    %71 = arith.addf %68, %70 : vector<1x256xf32>
    %c0_27 = arith.constant 0 : index
    %c0_28 = arith.constant 0 : index
    %c0_29 = arith.constant 0 : index
    %72 = vector.load %arg7[%c0_27, %c0_28, %c0_29] : memref<1x1x256xf32, #tpu.memory_space<vmem>>, vector<1x1x256xf32>
    %73 = vector.shape_cast %72 : vector<1x1x256xf32> to vector<1x256xf32>
    %74 = vector.shape_cast %71 : vector<1x256xf32> to vector<1x1x256xf32>
    tpu.vector_store %arg7[%c0_27, %c0_28, %c0_29], %74 {strides = array<i32>} : memref<1x1x256xf32, #tpu.memory_space<vmem>>, vector<1x1x256xf32>,
    return
  }
  func.func @transform_0(%arg0: i32) -> (i32, i32, i32) {
    %c0_i32 = arith.constant 0 : i32
    %c0_i32_0 = arith.constant 0 : i32
    %c0_i32_1 = arith.constant 0 : i32
    return %arg0, %c0_i32, %c0_i32_0 : i32, i32, i32
  }
  func.func @transform_1(%arg0: i32) -> (i32, i32) {
    %c0_i32 = arith.constant 0 : i32
    %c0_i32_0 = arith.constant 0 : i32
    %c0_i32_1 = arith.constant 0 : i32
    return %c0_i32, %c0_i32_0 : i32, i32
  }
  func.func @transform_2(%arg0: i32) -> (i32, i32) {
    %c0_i32 = arith.constant 0 : i32
    %c0_i32_0 = arith.constant 0 : i32
    %c0_i32_1 = arith.constant 0 : i32
    return %c0_i32, %c0_i32_0 : i32, i32
  }
  func.func @transform_3(%arg0: i32) -> (i32, i32) {
    %c0_i32 = arith.constant 0 : i32
    %c0_i32_0 = arith.constant 0 : i32
    %c0_i32_1 = arith.constant 0 : i32
    return %c0_i32, %c0_i32_0 : i32, i32
  }
  func.func @transform_4(%arg0: i32) -> (i32, i32) {
    %c0_i32 = arith.constant 0 : i32
    %c0_i32_0 = arith.constant 0 : i32
    %c0_i32_1 = arith.constant 0 : i32
    return %c0_i32, %c0_i32_0 : i32, i32
  }
  func.func @transform_5(%arg0: i32) -> (i32, i32) {
    %c0_i32 = arith.constant 0 : i32
    %c0_i32_0 = arith.constant 0 : i32
    %c0_i32_1 = arith.constant 0 : i32
    return %c0_i32, %c0_i32_0 : i32, i32
  }
  func.func @transform_6(%arg0: i32) -> (i32, i32, i32) {
    %c0_i32 = arith.constant 0 : i32
    %c0_i32_0 = arith.constant 0 : i32
    %c0_i32_1 = arith.constant 0 : i32
    return %arg0, %c0_i32, %c0_i32_0 : i32, i32, i32
  }
}

</mosaic_0001>

<llo_original>
// kernel: tpu_custom_call.1
$region0: #{tpu_custom_call.1}
  #allocation0 [shape = 'u32[]', space=smem, size = 0x4, offset = 0x4, fixed_abs, tag = 'smem constant byte address 0x4 - core index']
  #allocation1 [shape = 'u32[144,128]{1,0:T(1,128)}', space=vmem, size = 0x12000, scoped, tag = 'internal scratch']
  %s0 = inlined_call_operand.hbm [shape: f32[2,8,32], index: 0, kind: input, shape index: {}]
  %s1 = inlined_call_operand.hbm [shape: f32[32,256], index: 1, kind: input, shape index: {}]
  %s2 = inlined_call_operand.vmem [shape: f32[32,64], index: 2, kind: input, shape index: {}]
  %s3 = inlined_call_operand.hbm [shape: f32[32,256], index: 3, kind: input, shape index: {}]
  %s4 = inlined_call_operand.vmem [shape: f32[32,1], index: 4, kind: input, shape index: {}]
  %s5 = inlined_call_operand.vmem [shape: f32[4,32], index: 5, kind: input, shape index: {}]
  %s6 = inlined_call_operand.hbm [shape: f32[2,1,256], index: 6, kind: output, shape index: {}]
  %s7 = sld [smem:[#allocation0]]
  $region69: #{tpu_custom_call.1} parent=0
    _
  %s9 = ssub.s32 1, %s7
  %s10 = scalar_select 0, %s9, %s7
  $region1: #{tpu_custom_call.1} parent=0
    #allocation2 [shape = 'u8[8192]{0}', space=vmem, size = 0x2000, scoped, tag = 'input window, operand 0']
    #allocation3 [shape = 's32[2]{0}', space=sflag, size = 0x8, scoped, tag = 'scoped memory for tpu_custom_call.1']
    #allocation4 [shape = 's32[2]{0}', space=sflag, size = 0x8, scoped, tag = 'scoped memory for tpu_custom_call.1']
    #allocation5 [shape = 'u8[32768]{0}', space=vmem, size = 0x8000, scoped, tag = 'input window, operand 1, single buffered']
    #allocation6 [shape = 's32[1]{0}', space=sflag, size = 0x4, scoped, tag = 'scoped memory for tpu_custom_call.1']
    #allocation7 [shape = 'u8[32768]{0}', space=vmem, size = 0x8000, scoped, tag = 'input window, operand 3, single buffered']
    #allocation8 [shape = 'u8[2048]{0}', space=vmem, size = 0x800, scoped, tag = 'output window, operand 0']
    %11 = vsyncpa [#allocation3], 0
    %s12 = scalar_lea.sflag [#allocation3], 1
    %13 = vsyncpa %s12, 0
    %14 = vsyncpa [#allocation6], 0
    %15 = vsyncpa [#allocation4], 0
    %s16 = scalar_lea.sflag [#allocation4], 1
    %17 = vsyncpa %s16, 0
    loop: start=0, step=1, limit=4
    $region2: #{tpu_custom_call.1} parent=1 // loop_pre_header
      _
    $region3: #{tpu_custom_call.1} parent=1 // loop_header
      %s19 = sphi 0, %s23
      %p20 = scmp.ge.s32.totalorder %s19, 4
      %s29 = sphi 0, %s31
      %s32 = sphi 0, %s29
      %s33 = sphi 0, %s32
      %s49 = sphi 0, %s33
      %s53 = sphi 0, %s53
      %s55 = sphi 0, %s53
      %s56 = sphi 0, %s55
      %s70 = sphi 0, %s56
      %s74 = sphi 0, %s74
      %s76 = sphi 0, %s74
      %s77 = sphi 0, %s76
      %s91 = sphi 0, %s77
      %s95 = sphi 0, %s95
      %s97 = sphi 0, %s95
      %s98 = sphi 0, %s97
      %s112 = sphi 0, %s98
      %s116 = sphi 0, %s116
      %s118 = sphi 0, %s116
      %s119 = sphi 0, %s118
      %s133 = sphi 0, %s119
      %s137 = sphi 0, %s137
      %s139 = sphi 0, %s137
      %s140 = sphi 0, %s139
      %s154 = sphi 0, %s140
      %s160 = sphi 0, %s162
      %s163 = sphi 0, %s160
      %s164 = sphi 0, %s163
      %s180 = sphi 0, %s164
    $region4: #{tpu_custom_call.1} parent=1 // loop_header_branch
      %22 = sbr.rel (%p20) target = $region8
    $region5: #{tpu_custom_call.1} parent=1 // loop_body
      %s24 = ssub.s32 %s19, 1
      %s25 = ssub.s32 %s19, 2
      %s26 = sadd.s32 %s19, 1
      %s27 = ssub.s32 %s19, %s26
      %p28 = scmp.eq.s32.totalorder %s27, 0
      %s30 = sadd.s32 %s29, 1
      %s31 = scalar_select %p28, %s29, %s30
      %p34 = pneg %p28
      %p35 = scmp.eq.s32.totalorder %s19, 1
      %p36 = por %p34, %p35
      %p37 = scmp.ne.s32.totalorder %s29, %s32
      %p38 = scmp.eq.s32.totalorder %s19, 0
      %p39 = por %p37, %p38
      %p40 = scmp.ne.s32.totalorder %s29, %s32
      %p41 = scmp.eq.s32.totalorder %s24, 1
      %p42 = por %p40, %p41
      %p43 = scmp.ne.s32.totalorder %s32, %s33
      %p44 = scmp.eq.s32.totalorder %s24, 0
      %p45 = por %p43, %p44
      %p46 = scmp.ne.s32.totalorder %s32, %s33
      %p47 = scmp.eq.s32.totalorder %s25, 1
      %p48 = por %p46, %p47
      %p50 = scmp.ne.s32.totalorder %s33, %s49
      %p51 = scmp.eq.s32.totalorder %s25, 0
      %p52 = por %p50, %p51
      %s54 = sadd.s32 %s53, 1
      %p57 = scmp.eq.s32.totalorder %s19, 1
      %p58 = scmp.ne.s32.totalorder %s53, %s55
      %p59 = scmp.eq.s32.totalorder %s19, 0
      %p60 = por %p58, %p59
      %p61 = scmp.ne.s32.totalorder %s53, %s55
      %p62 = scmp.eq.s32.totalorder %s24, 1
      %p63 = por %p61, %p62
      %p64 = scmp.ne.s32.totalorder %s55, %s56
      %p65 = scmp.eq.s32.totalorder %s24, 0
      %p66 = por %p64, %p65
      %p67 = scmp.ne.s32.totalorder %s55, %s56
      %p68 = scmp.eq.s32.totalorder %s25, 1
      %p69 = por %p67, %p68
      %p71 = scmp.ne.s32.totalorder %s56, %s70
      %p72 = scmp.eq.s32.totalorder %s25, 0
      %p73 = por %p71, %p72
      %s75 = sadd.s32 %s74, 1
      %p78 = scmp.eq.s32.totalorder %s19, 1
      %p79 = scmp.ne.s32.totalorder %s74, %s76
      %p80 = scmp.eq.s32.totalorder %s19, 0
      %p81 = por %p79, %p80
      %p82 = scmp.ne.s32.totalorder %s74, %s76
      %p83 = scmp.eq.s32.totalorder %s24, 1
      %p84 = por %p82, %p83
      %p85 = scmp.ne.s32.totalorder %s76, %s77
      %p86 = scmp.eq.s32.totalorder %s24, 0
      %p87 = por %p85, %p86
      %p88 = scmp.ne.s32.totalorder %s76, %s77
      %p89 = scmp.eq.s32.totalorder %s25, 1
      %p90 = por %p88, %p89
      %p92 = scmp.ne.s32.totalorder %s77, %s91
      %p93 = scmp.eq.s32.totalorder %s25, 0
      %p94 = por %p92, %p93
      %s96 = sadd.s32 %s95, 1
      %p99 = scmp.eq.s32.totalorder %s19, 1
      %p100 = scmp.ne.s32.totalorder %s95, %s97
      %p101 = scmp.eq.s32.totalorder %s19, 0
      %p102 = por %p100, %p101
      %p103 = scmp.ne.s32.totalorder %s95, %s97
      %p104 = scmp.eq.s32.totalorder %s24, 1
      %p105 = por %p103, %p104
      %p106 = scmp.ne.s32.totalorder %s97, %s98
      %p107 = scmp.eq.s32.totalorder %s24, 0
      %p108 = por %p106, %p107
      %p109 = scmp.ne.s32.totalorder %s97, %s98
      %p110 = scmp.eq.s32.totalorder %s25, 1
      %p111 = por %p109, %p110
      %p113 = scmp.ne.s32.totalorder %s98, %s112
      %p114 = scmp.eq.s32.totalorder %s25, 0
      %p115 = por %p113, %p114
      %s117 = sadd.s32 %s116, 1
      %p120 = scmp.eq.s32.totalorder %s19, 1
      %p121 = scmp.ne.s32.totalorder %s116, %s118
      %p122 = scmp.eq.s32.totalorder %s19, 0
      %p123 = por %p121, %p122
      %p124 = scmp.ne.s32.totalorder %s116, %s118
      %p125 = scmp.eq.s32.totalorder %s24, 1
      %p126 = por %p124, %p125
      %p127 = scmp.ne.s32.totalorder %s118, %s119
      %p128 = scmp.eq.s32.totalorder %s24, 0
      %p129 = por %p127, %p128
      %p130 = scmp.ne.s32.totalorder %s118, %s119
      %p131 = scmp.eq.s32.totalorder %s25, 1
      %p132 = por %p130, %p131
      %p134 = scmp.ne.s32.totalorder %s119, %s133
      %p135 = scmp.eq.s32.totalorder %s25, 0
      %p136 = por %p134, %p135
      %s138 = sadd.s32 %s137, 1
      %p141 = scmp.eq.s32.totalorder %s19, 1
      %p142 = scmp.ne.s32.totalorder %s137, %s139
      %p143 = scmp.eq.s32.totalorder %s19, 0
      %p144 = por %p142, %p143
      %p145 = scmp.ne.s32.totalorder %s137, %s139
      %p146 = scmp.eq.s32.totalorder %s24, 1
      %p147 = por %p145, %p146
      %p148 = scmp.ne.s32.totalorder %s139, %s140
      %p149 = scmp.eq.s32.totalorder %s24, 0
      %p150 = por %p148, %p149
      %p151 = scmp.ne.s32.totalorder %s139, %s140
      %p152 = scmp.eq.s32.totalorder %s25, 1
      %p153 = por %p151, %p152
      %p155 = scmp.ne.s32.totalorder %s140, %s154
      %p156 = scmp.eq.s32.totalorder %s25, 0
      %p157 = por %p155, %p156
      %s158 = ssub.s32 %s19, %s26
      %p159 = scmp.eq.s32.totalorder %s158, 0
      %s161 = sadd.s32 %s160, 1
      %s162 = scalar_select %p159, %s160, %s161
      %p165 = pneg %p159
      %p166 = scmp.eq.s32.totalorder %s19, 1
      %p167 = por %p165, %p166
      %p168 = scmp.ne.s32.totalorder %s160, %s163
      %p169 = scmp.eq.s32.totalorder %s19, 0
      %p170 = por %p168, %p169
      %p171 = scmp.ne.s32.totalorder %s160, %s163
      %p172 = scmp.eq.s32.totalorder %s24, 1
      %p173 = por %p171, %p172
      %p174 = scmp.ne.s32.totalorder %s163, %s164
      %p175 = scmp.eq.s32.totalorder %s24, 0
      %p176 = por %p174, %p175
      %p177 = scmp.ne.s32.totalorder %s163, %s164
      %p178 = scmp.eq.s32.totalorder %s25, 1
      %p179 = por %p177, %p178
      %p181 = scmp.ne.s32.totalorder %s164, %s180
      %p182 = scmp.eq.s32.totalorder %s25, 0
      %p183 = por %p181, %p182
      %p184 = scmp.le.s32.totalorder 1, %s19
      %p185 = scmp.lt.s32.totalorder %s19, 3
      %p186 = pnand %p184, %p185
      %p187 = pneg %p186
      // Predicated region
      $region9: #{tpu_custom_call.1} parent=5 // pred_check
        _
      $region10: #{tpu_custom_call.1} parent=5 // pred_check_branch
        %189 = sbr.rel (%p186) target = $region12
      $region11: #{tpu_custom_call.1} parent=5 // pred_region
        %s190 = ssub.s32 %s19, 1
        // Predicated region
        $region13: #{tpu_custom_call.1} parent=11 // pred_check
          %p191 = pneg %p66
        $region14: #{tpu_custom_call.1} parent=11 // pred_check_branch
          %193 = sbr.rel (%p191) target = $region16
        $region15: #{tpu_custom_call.1} parent=11 // pred_region
          %s195 = ssub.s32 1024, 1024
          %196 = vsyncadd [#allocation6], %s195
          %s197 = sshll.u32 [#allocation5], 4
          %s198 = int_to_ptr.vmem [resolvable:$true] %s197
          %203 = dma.hbm_to_vmem [thread:$0]  %s1, 1024, %s198, [#allocation6], 256, 256, 16
        $region16: #{tpu_custom_call.1} parent=11 // pred_fallthru
          _
        // Predicated region
        $region17: #{tpu_custom_call.1} parent=11 // pred_check
          %p204 = pneg %p87
        $region18: #{tpu_custom_call.1} parent=11 // pred_check_branch
          %206 = sbr.rel (%p204) target = $region20
        $region19: #{tpu_custom_call.1} parent=11 // pred_region
          _
        $region20: #{tpu_custom_call.1} parent=11 // pred_fallthru
          _
        // Predicated region
        $region21: #{tpu_custom_call.1} parent=11 // pred_check
          %p207 = pneg %p108
        $region22: #{tpu_custom_call.1} parent=11 // pred_check_branch
          %209 = sbr.rel (%p207) target = $region24
        $region23: #{tpu_custom_call.1} parent=11 // pred_region
          %s211 = ssub.s32 1024, 1024
          %212 = vsyncadd [#allocation6], %s211
          %s213 = sshll.u32 [#allocation7], 4
          %s214 = int_to_ptr.vmem [resolvable:$true] %s213
          %219 = dma.hbm_to_vmem [thread:$0]  %s3, 1024, %s214, [#allocation6], 256, 256, 16
        $region24: #{tpu_custom_call.1} parent=11 // pred_fallthru
          _
        // Predicated region
        $region25: #{tpu_custom_call.1} parent=11 // pred_check
          %p220 = pneg %p129
        $region26: #{tpu_custom_call.1} parent=11 // pred_check_branch
          %222 = sbr.rel (%p220) target = $region28
        $region27: #{tpu_custom_call.1} parent=11 // pred_region
          _
        $region28: #{tpu_custom_call.1} parent=11 // pred_fallthru
          _
        // Predicated region
        $region29: #{tpu_custom_call.1} parent=11 // pred_check
          %p223 = pneg %p150
        $region30: #{tpu_custom_call.1} parent=11 // pred_check_branch
          %225 = sbr.rel (%p223) target = $region32
        $region31: #{tpu_custom_call.1} parent=11 // pred_region
          _
        $region32: #{tpu_custom_call.1} parent=11 // pred_fallthru
          _
      $region12: #{tpu_custom_call.1} parent=5 // pred_fallthru
        _
      %p226 = scmp.lt.s32.totalorder %s19, 2
      // Predicated region
      $region33: #{tpu_custom_call.1} parent=5 // pred_check
        %p227 = pneg %p226
      $region34: #{tpu_custom_call.1} parent=5 // pred_check_branch
        %229 = sbr.rel (%p227) target = $region36
      $region35: #{tpu_custom_call.1} parent=5 // pred_region
        // Predicated region
        $region37: #{tpu_custom_call.1} parent=35 // pred_check
          %p230 = pneg %p39
        $region38: #{tpu_custom_call.1} parent=35 // pred_check_branch
          %232 = sbr.rel (%p230) target = $region40
        $region39: #{tpu_custom_call.1} parent=35 // pred_region
          %s233 = sand.u32 %s29, 1
          %s234 = scalar_lea.sflag [#allocation3], %s233
          %s235 = sand.u32 %s29, 1
          %s236 = smul.addr %s235, 8
          %s237 = scalar_lea.vmem [#allocation2], %s236
          %s239 = ssub.s32 128, 128
          %240 = vsyncadd %s234, %s239
          %s241 = smul.addr %s19, 128
          %s242 = scalar_lea.hbm %s0, %s241
          %s244 = sshll.u32 %s237, 4
          %s245 = int_to_ptr.vmem [resolvable:$true] %s244
          %247 = dma.hbm_to_vmem [thread:$0]  %s242, 128, %s245, %s234
        $region40: #{tpu_custom_call.1} parent=35 // pred_fallthru
          _
      $region36: #{tpu_custom_call.1} parent=5 // pred_fallthru
        _
      %p248 = scmp.le.s32.totalorder 1, %s19
      %p249 = scmp.lt.s32.totalorder %s19, 3
      %p250 = pnand %p248, %p249
      %p251 = pneg %p250
      // Predicated region
      $region41: #{tpu_custom_call.1} parent=5 // pred_check
        _
      $region42: #{tpu_custom_call.1} parent=5 // pred_check_branch
        %253 = sbr.rel (%p250) target = $region44
      $region43: #{tpu_custom_call.1} parent=5 // pred_region
        %s254 = ssub.s32 %s19, 1
        %s255 = sand.u32 %s32, 1
        %s256 = scalar_lea.sflag [#allocation3], %s255
        %s257 = sand.u32 %s32, 1
        %s258 = smul.addr %s257, 8
        %s259 = scalar_lea.vmem [#allocation2], %s258
        // Predicated region
        $region45: #{tpu_custom_call.1} parent=43 // pred_check
          %p260 = pneg %p45
        $region46: #{tpu_custom_call.1} parent=43 // pred_check_branch
          %262 = sbr.rel (%p260) target = $region48
        $region47: #{tpu_custom_call.1} parent=43 // pred_region
          %263 = dma.done %s256, 128
        $region48: #{tpu_custom_call.1} parent=43 // pred_fallthru
          _
        // Predicated region
        $region49: #{tpu_custom_call.1} parent=43 // pred_check
          %p264 = pneg %p66
        $region50: #{tpu_custom_call.1} parent=43 // pred_check_branch
          %266 = sbr.rel (%p264) target = $region52
        $region51: #{tpu_custom_call.1} parent=43 // pred_region
          %267 = dma.done [#allocation6], 1024
        $region52: #{tpu_custom_call.1} parent=43 // pred_fallthru
          _
        // Predicated region
        $region53: #{tpu_custom_call.1} parent=43 // pred_check
          %p268 = pneg %p108
        $region54: #{tpu_custom_call.1} parent=43 // pred_check_branch
          %270 = sbr.rel (%p268) target = $region56
        $region55: #{tpu_custom_call.1} parent=43 // pred_region
          %271 = dma.done [#allocation6], 1024
        $region56: #{tpu_custom_call.1} parent=43 // pred_fallthru
          _
        %s272 = sand.u32 %s32, 1
        %s273 = scalar_lea.sflag [#allocation3], %s272
        %s274 = sand.u32 %s32, 1
        %s275 = smul.addr %s274, 8
        %s276 = scalar_lea.vmem [#allocation2], %s275
        %p277 = pneg %p45
        %p278 = pneg %p42
        %p279 = pneg %p66
        %p280 = pneg %p63
        %p281 = pneg %p87
        %p282 = pneg %p84
        %p283 = pneg %p108
        %p284 = pneg %p105
        %p285 = pneg %p129
        %p286 = pneg %p126
        %p287 = pneg %p150
        %p288 = pneg %p147
        %p289 = pneg %p176
        %p290 = pneg %p173
        %s291 = sand.u32 %s163, 1
        %s292 = scalar_lea.sflag [#allocation4], %s291
        %s293 = sand.u32 %s163, 1
        %s294 = smul.addr %s293, 2
        %s295 = scalar_lea.vmem [#allocation8], %s294
        %v296 = vld [vmem:[%s259] sm:$0xff]
        %v297 = vld [vmem:[%s5] sm:$0xf]
        %vm298 = vcmask 261120
        %v299 = vsel %vm298, %v296, 0.0
        %300 = vadd.xlane.f32.xlu0 %v299
        %v301 = vpop.xlane.xlu0 %300
        %v302 = vrcp.pop 32.0
        %v303 = vmul.f32 %v301, %v302
        %v304 = vsub.f32 %v296, %v303
        %v305 = vmul.f32 %v304, %v304
        %v306 = vsel %vm298, %v305, 0.0
        %307 = vadd.xlane.f32.xlu0 %v306
        %v308 = vpop.xlane.xlu0 %307
        %v309 = vmul.f32 %v308, %v302
        %v310 = vadd.f32 %v309, 1e-05
        %v311 = vrsqrt.pop %v310
        %v312 = vmul.f32 %v304, %v311
        %v313 = vlaneseq
        %v314 = vshrl.u32 %v313, 7
        %v315 = vsub.s32 0, %v314
        %v316 = vrot.slane %v297, %v315
        %v317 = vmul.f32 %v312, %v316
        %v318 = vlaneseq
        %v319 = vshrl.u32 %v318, 7
        %v320 = vsub.s32 1, %v319
        %v321 = vrot.slane %v297, %v320
        %v322 = vadd.f32 %v317, %v321
        %v323 = vld [vmem:[%s2] sm:$0xff]
        %v324 = vld [vmem:[%s2 + $0x8] sm:$0xff]
        %v325 = vld [vmem:[%s2 + $0x10] sm:$0xff]
        %v326 = vld [vmem:[%s2 + $0x18] sm:$0xff]
        %v328 = vsel %vm298, %v322, 0
        %330 = vmatprep.subr.mxu0 0.0
        %331 = vmatpush1.msra.mxu0 0.0
        %332 = vmatprep.subr.mxu0 0.0
        %333 = vmatpush1.msra.mxu0 0.0
        %334 = vmatprep.subr.mxu0 0.0
        %335 = vmatpush1.msra.mxu0 0.0
        %336 = vmatprep.subr.mxu0 0.0
        %337 = vmatpush1.msra.mxu0 0.0
        %338 = vmatprep.subr.mxu0 0.0
        %339 = vmatpush1.msra.mxu0 0.0
        %340 = vmatprep.subr.mxu0 0.0
        %341 = vmatpush1.msra.mxu0 0.0
        %342 = vmatprep.subr.mxu0 0.0
        %343 = vmatpush1.msra.mxu0 0.0
        %344 = vmatprep.subr.mxu0 0.0
        %345 = vmatpush1.msra.mxu0 0.0
        %346 = vmatprep.subr.mxu0 0.0
        %347 = vmatpush1.msra.mxu0 0.0
        %348 = vmatprep.subr.mxu0 0.0
        %349 = vmatpush1.msra.mxu0 0.0
        %350 = vmatprep.subr.mxu0 0.0
        %351 = vmatpush1.msra.mxu0 0.0
        %352 = vmatprep.subr.mxu0 0.0
        %353 = vmatpush1.msra.mxu0 0.0
        %354 = vmatprep.subr.mxu0 0.0
        %355 = vmatpush1.msra.mxu0 %v326
        %356 = vmatprep.subr.mxu0 0.0
        %357 = vmatpush1.msra.mxu0 %v325
        %358 = vmatprep.subr.mxu0 0.0
        %359 = vmatpush1.msra.mxu0 %v324
        %360 = vmatprep.subr.mxu0 0.0
        %361 = vmatpush1.msra.mxu0 %v323
        %362 = vmatprep.subr.mxu0 0.0
        %363 = vmatpush2.msra.mxu0 0.0
        %364 = vmatprep.subr.mxu0 0.0
        %365 = vmatpush2.msra.mxu0 0.0
        %366 = vmatprep.subr.mxu0 0.0
        %367 = vmatpush2.msra.mxu0 0.0
        %368 = vmatprep.subr.mxu0 0.0
        %369 = vmatpush2.msra.mxu0 0.0
        %370 = vmatprep.subr.mxu0 0.0
        %371 = vmatpush2.msra.mxu0 0.0
        %372 = vmatprep.subr.mxu0 0.0
        %373 = vmatpush2.msra.mxu0 0.0
        %374 = vmatprep.subr.mxu0 0.0
        %375 = vmatpush2.msra.mxu0 0.0
        %376 = vmatprep.subr.mxu0 0.0
        %377 = vmatpush2.msra.mxu0 0.0
        %378 = vmatprep.subr.mxu0 0.0
        %379 = vmatpush2.msra.mxu0 0.0
        %380 = vmatprep.subr.mxu0 0.0
        %381 = vmatpush2.msra.mxu0 0.0
        %382 = vmatprep.subr.mxu0 0.0
        %383 = vmatpush2.msra.mxu0 0.0
        %384 = vmatprep.subr.mxu0 0.0
        %385 = vmatpush2.msra.mxu0 0.0
        %386 = vmatprep.subr.mxu0 0.0
        %387 = vmatpush2.msra.mxu0 0.0
        %388 = vmatprep.subr.mxu0 0.0
        %389 = vmatpush2.msra.mxu0 0.0
        %390 = vmatprep.subr.mxu0 0.0
        %391 = vmatpush2.msra.mxu0 0.0
        %392 = vmatprep.subr.mxu0 0.0
        %393 = vmatpush2.msra.mxu0 0.0
        %394 = vmatprep.mubr.f32.mxu0 0.0
        %395 = vmatmul.mubr.f32.gmra.mxu0 %v328
        %v396 = vpop.f32.mrf.mxu0
        %v397 = vadd.f32 0.0, %v396
        %v398 = vpop.f32.mrf.mxu0
        %399 = vdwg.mxu0
        %v400 = vlaneseq
        %v401 = vshrl.u32 %v400, 7
        %v402 = vsub.s32 2, %v401
        %v403 = vrot.slane %v297, %v402
        %v404 = vadd.f32 %v397, %v403
        %v405 = vld [vmem:[#allocation5] sm:$0xff]
        %v406 = vld [vmem:[#allocation5 + $0x8] sm:$0xff]
        %v407 = vld [vmem:[#allocation5 + $0x10] sm:$0xff]
        %v408 = vld [vmem:[#allocation5 + $0x18] sm:$0xff]
        %v409 = vld [vmem:[#allocation5 + $0x20] sm:$0xff]
        %v410 = vld [vmem:[#allocation5 + $0x28] sm:$0xff]
        %v411 = vld [vmem:[#allocation5 + $0x30] sm:$0xff]
        %v412 = vld [vmem:[#allocation5 + $0x38] sm:$0xff]
        %v414 = vsel %vm298, %v404, 0
        %416 = vmatprep.subr.mxu0 0.0
        %417 = vmatpush1.msra.mxu0 0.0
        %418 = vmatprep.subr.mxu0 0.0
        %419 = vmatpush1.msra.mxu0 0.0
        %420 = vmatprep.subr.mxu0 0.0
        %421 = vmatpush1.msra.mxu0 0.0
        %422 = vmatprep.subr.mxu0 0.0
        %423 = vmatpush1.msra.mxu0 0.0
        %424 = vmatprep.subr.mxu0 0.0
        %425 = vmatpush1.msra.mxu0 0.0
        %426 = vmatprep.subr.mxu0 0.0
        %427 = vmatpush1.msra.mxu0 0.0
        %428 = vmatprep.subr.mxu0 0.0
        %429 = vmatpush1.msra.mxu0 0.0
        %430 = vmatprep.subr.mxu0 0.0
        %431 = vmatpush1.msra.mxu0 0.0
        %432 = vmatprep.subr.mxu0 0.0
        %433 = vmatpush1.msra.mxu0 0.0
        %434 = vmatprep.subr.mxu0 0.0
        %435 = vmatpush1.msra.mxu0 0.0
        %436 = vmatprep.subr.mxu0 0.0
        %437 = vmatpush1.msra.mxu0 0.0
        %438 = vmatprep.subr.mxu0 0.0
        %439 = vmatpush1.msra.mxu0 0.0
        %440 = vmatprep.subr.mxu0 %v412
        %441 = vmatpush1.msra.mxu0 %v411
        %442 = vmatprep.subr.mxu0 %v410
        %443 = vmatpush1.msra.mxu0 %v409
        %444 = vmatprep.subr.mxu0 %v408
        %445 = vmatpush1.msra.mxu0 %v407
        %446 = vmatprep.subr.mxu0 %v406
        %447 = vmatpush1.msra.mxu0 %v405
        %448 = vmatprep.subr.mxu0 0.0
        %449 = vmatpush2.msra.mxu0 0.0
        %450 = vmatprep.subr.mxu0 0.0
        %451 = vmatpush2.msra.mxu0 0.0
        %452 = vmatprep.subr.mxu0 0.0
        %453 = vmatpush2.msra.mxu0 0.0
        %454 = vmatprep.subr.mxu0 0.0
        %455 = vmatpush2.msra.mxu0 0.0
        %456 = vmatprep.subr.mxu0 0.0
        %457 = vmatpush2.msra.mxu0 0.0
        %458 = vmatprep.subr.mxu0 0.0
        %459 = vmatpush2.msra.mxu0 0.0
        %460 = vmatprep.subr.mxu0 0.0
        %461 = vmatpush2.msra.mxu0 0.0
        %462 = vmatprep.subr.mxu0 0.0
        %463 = vmatpush2.msra.mxu0 0.0
        %464 = vmatprep.subr.mxu0 0.0
        %465 = vmatpush2.msra.mxu0 0.0
        %466 = vmatprep.subr.mxu0 0.0
        %467 = vmatpush2.msra.mxu0 0.0
        %468 = vmatprep.subr.mxu0 0.0
        %469 = vmatpush2.msra.mxu0 0.0
        %470 = vmatprep.subr.mxu0 0.0
        %471 = vmatpush2.msra.mxu0 0.0
        %472 = vmatprep.subr.mxu0 0.0
        %473 = vmatpush2.msra.mxu0 0.0
        %474 = vmatprep.subr.mxu0 0.0
        %475 = vmatpush2.msra.mxu0 0.0
        %476 = vmatprep.subr.mxu0 0.0
        %477 = vmatpush2.msra.mxu0 0.0
        %478 = vmatprep.subr.mxu0 0.0
        %479 = vmatpush2.msra.mxu0 0.0
        %480 = vmatprep.mubr.f32.mxu0 0.0
        %481 = vmatmul.mubr.f32.gmra.mxu0 %v414
        %v482 = vpop.f32.mrf.mxu0
        %v483 = vadd.f32 0.0, %v482
        %v484 = vpop.f32.mrf.mxu0
        %v485 = vadd.f32 0.0, %v484
        %486 = vdwg.mxu0
        %v487 = vrot.slane %v483, 4
        %v488 = vmax.f32 %v483, %v487
        %v489 = vrot.slane %v488, 2
        %v490 = vmax.f32 %v488, %v489
        %v491 = vrot.slane %v490, 1
        %v492 = vmax.f32 %v490, %v491
        %v493 = vrot.slane %v485, 4
        %v494 = vmax.f32 %v485, %v493
        %v495 = vrot.slane %v494, 2
        %v496 = vmax.f32 %v494, %v495
        %v497 = vrot.slane %v496, 1
        %v498 = vmax.f32 %v496, %v497
        %v499 = vsub.f32 %v483, %v492
        %v500 = vsub.f32 %v485, %v498
        %v501 = vmul.f32 %v499, 1.442695
        %v502 = vpow.pop %v501
        %v503 = vmul.f32 %v500, 1.442695
        %v504 = vpow.pop %v503
        %v505 = vrot.slane %v502, 4
        %v506 = vadd.f32 %v502, %v505
        %v507 = vrot.slane %v506, 2
        %v508 = vadd.f32 %v506, %v507
        %v509 = vrot.slane %v508, 1
        %v510 = vadd.f32 %v508, %v509
        %v511 = vrot.slane %v504, 4
        %v512 = vadd.f32 %v504, %v511
        %v513 = vrot.slane %v512, 2
        %v514 = vadd.f32 %v512, %v513
        %v515 = vrot.slane %v514, 1
        %v516 = vadd.f32 %v514, %v515
        %518 = vrot.lane.b32.xlu0 %v397, 96
        %v519 = vpop.permute.xlu0 %518
        %521 = vxpose.xlu0.b32.start [1/16] %v519, 128
        %522 = vxpose.xlu0.b32.cont [2/16] 0.0, 128
        %523 = vxpose.xlu0.b32.cont [3/16] 0.0, 128
        %524 = vxpose.xlu0.b32.cont [4/16] 0.0, 128
        %525 = vxpose.xlu0.b32.cont [5/16] 0.0, 128
        %526 = vxpose.xlu0.b32.cont [6/16] 0.0, 128
        %527 = vxpose.xlu0.b32.cont [7/16] 0.0, 128
        %528 = vxpose.xlu0.b32.cont [8/16] 0.0, 128
        %529 = vxpose.xlu0.b32.cont [9/16] 0.0, 128
        %530 = vxpose.xlu0.b32.cont [10/16] 0.0, 128
        %531 = vxpose.xlu0.b32.cont [11/16] 0.0, 128
        %532 = vxpose.xlu0.b32.cont [12/16] 0.0, 128
        %533 = vxpose.xlu0.b32.cont [13/16] 0.0, 128
        %534 = vxpose.xlu0.b32.cont [14/16] 0.0, 128
        %535 = vxpose.xlu0.b32.cont [15/16] 0.0, 128
        %536 = vxpose.xlu0.b32.end [16/16] 0.0, 128
        %v537 = vpop.trf.xlu0
        %v538 = vpop.trf.xlu0
        %v539 = vpop.trf.xlu0
        %v540 = vpop.trf.xlu0
        %v541 = vpop.trf.xlu0
        %v542 = vpop.trf.xlu0
        %v543 = vpop.trf.xlu0
        %v544 = vpop.trf.xlu0
        %v545 = vpop.trf.xlu0
        %v546 = vpop.trf.xlu0
        %v547 = vpop.trf.xlu0
        %v548 = vpop.trf.xlu0
        %v549 = vpop.trf.xlu0
        %v550 = vpop.trf.xlu0
        %v551 = vpop.trf.xlu0
        %v552 = vpop.trf.xlu0
        %vm553 = vcmask 64512
        %v555 = vsel %vm553, %v537, 0
        %v558 = vsel %vm553, %v538, 0
        %v561 = vsel %vm553, %v539, 0
        %v564 = vsel %vm553, %v540, 0
        %566 = vmatprep.subr.mxu0 0.0
        %567 = vmatpush1.msra.mxu0 0.0
        %568 = vmatprep.subr.mxu0 0.0
        %569 = vmatpush1.msra.mxu0 0.0
        %570 = vmatprep.subr.mxu0 0.0
        %571 = vmatpush1.msra.mxu0 0.0
        %572 = vmatprep.subr.mxu0 0.0
        %573 = vmatpush1.msra.mxu0 0.0
        %574 = vmatprep.subr.mxu0 0.0
        %575 = vmatpush1.msra.mxu0 0.0
        %576 = vmatprep.subr.mxu0 0.0
        %577 = vmatpush1.msra.mxu0 0.0
        %578 = vmatprep.subr.mxu0 0.0
        %579 = vmatpush1.msra.mxu0 0.0
        %580 = vmatprep.subr.mxu0 0.0
        %581 = vmatpush1.msra.mxu0 0.0
        %582 = vmatprep.subr.mxu0 0.0
        %583 = vmatpush1.msra.mxu0 0.0
        %584 = vmatprep.subr.mxu0 0.0
        %585 = vmatpush1.msra.mxu0 0.0
        %586 = vmatprep.subr.mxu0 0.0
        %587 = vmatpush1.msra.mxu0 0.0
        %588 = vmatprep.subr.mxu0 0.0
        %589 = vmatpush1.msra.mxu0 0.0
        %590 = vmatprep.subr.mxu0 0.0
        %591 = vmatpush1.msra.mxu0 0.0
        %592 = vmatprep.subr.mxu0 0.0
        %593 = vmatpush1.msra.mxu0 0.0
        %594 = vmatprep.subr.mxu0 0.0
        %595 = vmatpush1.msra.mxu0 0.0
        %596 = vmatprep.subr.mxu0 %v504
        %597 = vmatpush1.msra.mxu0 %v502
        %598 = vmatprep.subr.mxu0 0.0
        %599 = vmatpush2.msra.mxu0 0.0
        %600 = vmatprep.subr.mxu0 0.0
        %601 = vmatpush2.msra.mxu0 0.0
        %602 = vmatprep.subr.mxu0 0.0
        %603 = vmatpush2.msra.mxu0 0.0
        %604 = vmatprep.subr.mxu0 0.0
        %605 = vmatpush2.msra.mxu0 0.0
        %606 = vmatprep.subr.mxu0 0.0
        %607 = vmatpush2.msra.mxu0 0.0
        %608 = vmatprep.subr.mxu0 0.0
        %609 = vmatpush2.msra.mxu0 0.0
        %610 = vmatprep.subr.mxu0 0.0
        %611 = vmatpush2.msra.mxu0 0.0
        %612 = vmatprep.subr.mxu0 0.0
        %613 = vmatpush2.msra.mxu0 0.0
        %614 = vmatprep.subr.mxu0 0.0
        %615 = vmatpush2.msra.mxu0 0.0
        %616 = vmatprep.subr.mxu0 0.0
        %617 = vmatpush2.msra.mxu0 0.0
        %618 = vmatprep.subr.mxu0 0.0
        %619 = vmatpush2.msra.mxu0 0.0
        %620 = vmatprep.subr.mxu0 0.0
        %621 = vmatpush2.msra.mxu0 0.0
        %622 = vmatprep.subr.mxu0 0.0
        %623 = vmatpush2.msra.mxu0 0.0
        %624 = vmatprep.subr.mxu0 0.0
        %625 = vmatpush2.msra.mxu0 0.0
        %626 = vmatprep.subr.mxu0 0.0
        %627 = vmatpush2.msra.mxu0 0.0
        %628 = vmatprep.subr.mxu0 0.0
        %629 = vmatpush2.msra.mxu0 0.0
        %630 = vmatprep.mubr.f32.mxu0 0.0
        %631 = vmatmul.mubr.f32.gmra.mxu0 %v555
        %v632 = vpop.f32.mrf.mxu0
        %v633 = vadd.f32 0.0, %v632
        %v634 = vpop.f32.mrf.mxu0
        %v635 = vadd.f32 0.0, %v634
        %636 = vmatprep.mubr.f32.mxu0 0.0
        %637 = vmatmul.mubr.f32.gmra.mxu0 %v558
        %v638 = vpop.f32.mrf.mxu0
        %v639 = vadd.f32 0.0, %v638
        %v640 = vpop.f32.mrf.mxu0
        %v641 = vadd.f32 0.0, %v640
        %642 = vmatprep.mubr.f32.mxu0 0.0
        %643 = vmatmul.mubr.f32.gmra.mxu0 %v561
        %v644 = vpop.f32.mrf.mxu0
        %v645 = vadd.f32 0.0, %v644
        %v646 = vpop.f32.mrf.mxu0
        %v647 = vadd.f32 0.0, %v646
        %648 = vmatprep.mubr.f32.mxu0 0.0
        %649 = vmatmul.mubr.f32.gmra.mxu0 %v564
        %v650 = vpop.f32.mrf.mxu0
        %v651 = vadd.f32 0.0, %v650
        %v652 = vpop.f32.mrf.mxu0
        %v653 = vadd.f32 0.0, %v652
        %654 = vdwg.mxu0
        %v655 = vrcp.pop %v510
        %v656 = vrcp.pop %v516
        %v657 = vmul.f32 %v633, %v655
        %v658 = vmul.f32 %v635, %v656
        %v659 = vmul.f32 %v639, %v655
        %v660 = vmul.f32 %v641, %v656
        %v661 = vmul.f32 %v645, %v655
        %v662 = vmul.f32 %v647, %v656
        %v663 = vmul.f32 %v651, %v655
        %v664 = vmul.f32 %v653, %v656
        %v665 = vld [vmem:[#allocation7] sm:$0xff]
        %v666 = vld [vmem:[#allocation7 + $0x8] sm:$0xff]
        %v667 = vld [vmem:[#allocation7 + $0x10] sm:$0xff]
        %v668 = vld [vmem:[#allocation7 + $0x18] sm:$0xff]
        %v669 = vld [vmem:[#allocation7 + $0x20] sm:$0xff]
        %v670 = vld [vmem:[#allocation7 + $0x28] sm:$0xff]
        %v671 = vld [vmem:[#allocation7 + $0x30] sm:$0xff]
        %v672 = vld [vmem:[#allocation7 + $0x38] sm:$0xff]
        %v673 = vadd.f32 %v657, %v665
        %v674 = vadd.f32 %v658, %v666
        %v675 = vadd.f32 %v659, %v667
        %v676 = vadd.f32 %v660, %v668
        %v677 = vadd.f32 %v661, %v669
        %v678 = vadd.f32 %v662, %v670
        %v679 = vadd.f32 %v663, %v671
        %v680 = vadd.f32 %v664, %v672
        %v681 = vadd.f32 %v673, %v675
        %v682 = vadd.f32 %v681, %v677
        %v683 = vadd.f32 %v682, %v679
        %v684 = vrot.slane %v683, 4
        %v685 = vadd.f32 %v683, %v684
        %v686 = vrot.slane %v685, 2
        %v687 = vadd.f32 %v685, %v686
        %v688 = vrot.slane %v687, 1
        %v689 = vadd.f32 %v687, %v688
        %v690 = vadd.f32 %v674, %v676
        %v691 = vadd.f32 %v690, %v678
        %v692 = vadd.f32 %v691, %v680
        %v693 = vrot.slane %v692, 4
        %v694 = vadd.f32 %v692, %v693
        %v695 = vrot.slane %v694, 2
        %v696 = vadd.f32 %v694, %v695
        %v697 = vrot.slane %v696, 1
        %v698 = vadd.f32 %v696, %v697
        %v699 = vmul.f32 %v689, %v302
        %v700 = vmul.f32 %v698, %v302
        %v701 = vsub.f32 %v673, %v699
        %v702 = vsub.f32 %v674, %v700
        %v703 = vsub.f32 %v675, %v699
        %v704 = vsub.f32 %v676, %v700
        %v705 = vsub.f32 %v677, %v699
        %v706 = vsub.f32 %v678, %v700
        %v707 = vsub.f32 %v679, %v699
        %v708 = vsub.f32 %v680, %v700
        %v709 = vmul.f32 %v701, %v701
        %v710 = vmul.f32 %v702, %v702
        %v711 = vmul.f32 %v703, %v703
        %v712 = vmul.f32 %v704, %v704
        %v713 = vmul.f32 %v705, %v705
        %v714 = vmul.f32 %v706, %v706
        %v715 = vmul.f32 %v707, %v707
        %v716 = vmul.f32 %v708, %v708
        %v717 = vadd.f32 %v709, %v711
        %v718 = vadd.f32 %v717, %v713
        %v719 = vadd.f32 %v718, %v715
        %v720 = vrot.slane %v719, 4
        %v721 = vadd.f32 %v719, %v720
        %v722 = vrot.slane %v721, 2
        %v723 = vadd.f32 %v721, %v722
        %v724 = vrot.slane %v723, 1
        %v725 = vadd.f32 %v723, %v724
        %v726 = vadd.f32 %v710, %v712
        %v727 = vadd.f32 %v726, %v714
        %v728 = vadd.f32 %v727, %v716
        %v729 = vrot.slane %v728, 4
        %v730 = vadd.f32 %v728, %v729
        %v731 = vrot.slane %v730, 2
        %v732 = vadd.f32 %v730, %v731
        %v733 = vrot.slane %v732, 1
        %v734 = vadd.f32 %v732, %v733
        %v735 = vmul.f32 %v725, %v302
        %v736 = vmul.f32 %v734, %v302
        %v737 = vld [vmem:[%s4] sm:$0xff]
        %v738 = vld [vmem:[%s4 + $0x8] sm:$0xff]
        %v739 = vld [vmem:[%s4 + $0x10] sm:$0xff]
        %v740 = vld [vmem:[%s4 + $0x18] sm:$0xff]
        %742 = vset.pattern.permute.xlu0 0
        %743 = vperm.xlu0 %742, %v737
        %v744 = vpop.permute.xlu0 %743
        %747 = vset.pattern.permute.xlu0 0
        %748 = vperm.xlu0 %747, %v738
        %v749 = vpop.permute.xlu0 %748
        %752 = vset.pattern.permute.xlu0 0
        %753 = vperm.xlu0 %752, %v739
        %v754 = vpop.permute.xlu0 %753
        %757 = vset.pattern.permute.xlu0 0
        %758 = vperm.xlu0 %757, %v740
        %v759 = vpop.permute.xlu0 %758
        %v761 = vmul.f32 %v701, %v744
        %v762 = vmul.f32 %v702, %v744
        %v763 = vmul.f32 %v703, %v749
        %v764 = vmul.f32 %v704, %v749
        %v765 = vmul.f32 %v705, %v754
        %v766 = vmul.f32 %v706, %v754
        %v767 = vmul.f32 %v707, %v759
        %v768 = vmul.f32 %v708, %v759
        %v769 = vadd.f32 %v761, %v763
        %v770 = vadd.f32 %v769, %v765
        %v771 = vadd.f32 %v770, %v767
        %v772 = vrot.slane %v771, 4
        %v773 = vadd.f32 %v771, %v772
        %v774 = vrot.slane %v773, 2
        %v775 = vadd.f32 %v773, %v774
        %v776 = vrot.slane %v775, 1
        %v777 = vadd.f32 %v775, %v776
        %v778 = vadd.f32 %v762, %v764
        %v779 = vadd.f32 %v778, %v766
        %v780 = vadd.f32 %v779, %v768
        %v781 = vrot.slane %v780, 4
        %v782 = vadd.f32 %v780, %v781
        %v783 = vrot.slane %v782, 2
        %v784 = vadd.f32 %v782, %v783
        %v785 = vrot.slane %v784, 1
        %v786 = vadd.f32 %v784, %v785
        %v787 = vadd.f32 %v735, 1e-05
        %v788 = vadd.f32 %v736, 1e-05
        %v789 = vrsqrt.pop %v787
        %v790 = vrsqrt.pop %v788
        %v791 = vmul.f32 %v777, %v789
        %v792 = vmul.f32 %v786, %v790
        %794 = vset.pattern.permute.xlu0 0
        %795 = vperm.xlu0 %794, %v297
        %v796 = vpop.permute.xlu0 %795
        %v798 = vadd.f32 %v791, %v796
        %v799 = vadd.f32 %v792, %v796
        %v802 = vcombine.low %v798, %v799
        %v804 = vunpack.c.l.s4 1966171168
        %v805 = vunpack.c.0.s8 %v804
        %v806 = vlaneseq
        %v807 = vshrl.u32 %v806, 7
        %v808 = vsub.s32 %v805, %v807
        %v809 = vrot.slane %v802, %v808
        %v810 = vcombine.high %v809, %v809
        %v812 = vunpack.c.l.s4 1966171168
        %v813 = vunpack.c.0.s8 %v812
        %v814 = vlaneseq
        %v815 = vshrl.u32 %v814, 7
        %v816 = vsub.s32 %v813, %v815
        %v817 = vrot.slane %v810, %v816
        %v818 = vcombine.high %v817, %v817
        %v820 = vlaneseq
        %vm821 = vcmp.ge.s32.totalorder %v820, 0
        %vm822 = vcmp.lt.s32.totalorder %v820, 256
        %vm823 = vmand %vm821, %vm822
        %824 = vst.msk [vmem:[%s295] sm:$0x3] %vm823, %v818
        %s825 = sand.u32 %s163, 1
        %s826 = scalar_lea.sflag [#allocation4], %s825
        %s827 = sand.u32 %s163, 1
        %s828 = smul.addr %s827, 2
        %s829 = scalar_lea.vmem [#allocation8], %s828
        // Predicated region
        $region57: #{tpu_custom_call.1} parent=43 // pred_check
          %p830 = pneg %p173
        $region58: #{tpu_custom_call.1} parent=43 // pred_check_branch
          %832 = sbr.rel (%p830) target = $region60
        $region59: #{tpu_custom_call.1} parent=43 // pred_region
          %s834 = ssub.s32 32, 32
          %835 = vsyncadd %s826, %s834
          %s836 = smul.addr %s24, 2
          %s837 = smul.addr %s836, 16
          %s838 = scalar_lea.hbm %s6, %s837
          %s840 = sshll.u32 %s829, 4
          %s841 = int_to_ptr.vmem [resolvable:$true] %s840
          %843 = dma.vmem_to_hbm [thread:$0]  %s841, 32, %s838, %s826
        $region60: #{tpu_custom_call.1} parent=43 // pred_fallthru
          _
      $region44: #{tpu_custom_call.1} parent=5 // pred_fallthru
        _
      %p844 = scmp.le.s32.totalorder 2, %s19
      // Predicated region
      $region61: #{tpu_custom_call.1} parent=5 // pred_check
        %p845 = pneg %p844
      $region62: #{tpu_custom_call.1} parent=5 // pred_check_branch
        %847 = sbr.rel (%p845) target = $region64
      $region63: #{tpu_custom_call.1} parent=5 // pred_region
        %s848 = ssub.s32 %s19, 2
        // Predicated region
        $region65: #{tpu_custom_call.1} parent=63 // pred_check
          %p849 = pneg %p179
        $region66: #{tpu_custom_call.1} parent=63 // pred_check_branch
          %851 = sbr.rel (%p849) target = $region68
        $region67: #{tpu_custom_call.1} parent=63 // pred_region
          %s852 = sand.u32 %s164, 1
          %s853 = scalar_lea.sflag [#allocation4], %s852
          %s854 = sand.u32 %s164, 1
          %s855 = smul.addr %s854, 2
          %s856 = scalar_lea.vmem [#allocation8], %s855
          %857 = dma.done %s853, 32
        $region68: #{tpu_custom_call.1} parent=63 // pred_fallthru
          _
      $region64: #{tpu_custom_call.1} parent=5 // pred_fallthru
        _
    $region6: #{tpu_custom_call.1} parent=1 // loop_footer
      %s23 = sadd.s32 1, %s19
    $region7: #{tpu_custom_call.1} parent=1 // loop_footer_branch
      %18 = sbr.rel target = $region3
    $region8: #{tpu_custom_call.1} parent=1 // loop_exit
      _
    %858 = vsyncpa [#allocation3], 1
    %s859 = scalar_lea.sflag [#allocation3], 1
    %860 = vsyncpa %s859, 1
    %861 = vsyncpa [#allocation6], 1
    %862 = vsyncpa [#allocation4], 1
    %s863 = scalar_lea.sflag [#allocation4], 1
    %864 = vsyncpa %s863, 1

</llo_original>
